<compile_context>
chip_gen: v7x
topology: tpu7x:2x2x1
jax: 0.10.0
libtpu: 0.0.40
codegen_flags: <defaults>
</compile_context>

<pallas_src>
import math
import functools

import jax
import jax.numpy as jnp
from jax.experimental import pallas as pl
from jax.experimental.pallas import tpu as pltpu


def make_positional_encoding_table(d_model, max_len):
    """Deterministic buffer, same recipe as the torch __init__ (float32)."""
    position = jnp.arange(0, max_len, dtype=jnp.float32)[:, None]            # (L, 1)
    div_term = jnp.exp(
        jnp.arange(0, d_model, 2, dtype=jnp.float32) * (-math.log(10000.0) / d_model)
    )                                                                         # (D/2,)
    ang = position * div_term                                                 # (L, D/2)
    pe = jnp.zeros((max_len, d_model), dtype=jnp.float32)
    pe = pe.at[:, 0::2].set(jnp.sin(ang))
    pe = pe.at[:, 1::2].set(jnp.cos(ang))
    return pe[:, None, :]                                                     # (L, 1, D)


# ---------------------------------------------------------------------------
# Kernels
# ---------------------------------------------------------------------------

def _pe_eval_kernel(x_ref, pe_ref, o_ref):
    # x_ref: (TBx, TS, D); pe_ref: (TBpe, 1, D) -> one broadcast add on the VPU.
    o_ref[...] = (x_ref[...] + pe_ref[...]).astype(o_ref.dtype)


def _pe_train_kernel(x_ref, pe_ref, bits_ref, o_ref, *, threshold, scale):
    # Inverted dropout: keep iff bits >= threshold (bits uniform in [0, 2^31)).
    # Integer compare + one select + one mul; no float conversion of the bits.
    y = x_ref[...] + pe_ref[...]
    keep = bits_ref[...] >= jnp.int32(threshold)
    y = jnp.where(keep, y * jnp.asarray(scale, dtype=y.dtype), jnp.zeros_like(y))
    o_ref[...] = y.astype(o_ref.dtype)


# ---------------------------------------------------------------------------
# Tiling
# ---------------------------------------------------------------------------

def _choose_tiles(b_out, s, d, itemsize, target_bytes=2 * 1024 * 1024):
    """Pick (TB, TS) so one (TB, TS, D) block is ~2 MiB.

    With double-buffered in/out blocks this stays well under the default
    scoped-VMEM limit on every chip (incl. v7x's 64 MiB physical VMEM) while
    being large enough to amortize the ~0.35 us per-grid-step overhead.
    Constraint: TS is a multiple of 8 or equals the full S; D is kept whole
    (lane-dense output, multiple of 128 for typical d_model).
    """
    row_bytes = max(1, d * itemsize)
    rows = max(1, target_bytes // row_bytes)          # rows of length D per block
    if s <= rows:
        ts = s
        tb = max(1, min(b_out, rows // s))
    else:
        ts = min(s, max(8, (rows // 8) * 8))
        tb = 1
    return int(tb), int(ts)


# ---------------------------------------------------------------------------
# Wrapper
# ---------------------------------------------------------------------------

def positional_encoding_forward(x, pe, *, p=0.1, training=False, rng_key=None,
                                donate_x=False):
    """out = dropout(x + pe[:, :seq_len, :]) with the module's literal broadcasting."""
    B, S, D = x.shape
    max_len = pe.shape[0]
    # Same broadcast-legality rule torch enforces on the add:
    assert B == max_len or B == 1 or max_len == 1, "batch / max_len not broadcastable"
    B_out = max(B, max_len)

    # Literal slice of the singleton axis; cast once so the in-kernel add
    # stays in x's dtype (halves pe bytes and avoids f32 promotion for bf16).
    pe_sliced = pe[:, :S, :].astype(x.dtype)          # (max_len, 1, D)

    tb, ts = _choose_tiles(B_out, S, D, jnp.dtype(x.dtype).itemsize)
    grid = (pl.cdiv(B_out, tb), pl.cdiv(S, ts))       # seq axis innermost

    # Broadcast along the output batch axis by re-reading block 0 where the
    # source dim is 1 (no materialized broadcast in HBM).  pe's index_map is
    # constant along the inner (seq) axis -> its DMA is not re-issued per step.
    if B == B_out:
        x_spec = pl.BlockSpec((tb, ts, D), lambda ib, js: (ib, js, 0))
    else:  # B == 1
        x_spec = pl.BlockSpec((1, ts, D), lambda ib, js: (0, js, 0))
    if max_len == B_out:
        pe_spec = pl.BlockSpec((tb, 1, D), lambda ib, js: (ib, 0, 0))
    else:  # max_len == 1
        pe_spec = pl.BlockSpec((1, 1, D), lambda ib, js: (0, 0, 0))
    out_spec = pl.BlockSpec((tb, ts, D), lambda ib, js: (ib, js, 0))

    compiler_params = pltpu.CompilerParams(
        # Both grid axes are fully independent -> megacore sharding on v7x;
        # no-op on single-TC v5e/v6e.
        dimension_semantics=("parallel", "parallel"),
        vmem_limit_bytes=32 * 1024 * 1024,
    )

    io_aliases = {}
    if donate_x and B == B_out:
        io_aliases = {0: 0}   # reuse x's HBM buffer for the output (caller donates x)

    if training and p > 0.0:
        # TODO(synk): torch.nn.Dropout's RNG stream is not reproducible
        # bit-for-bit; random bits are drawn in the wrapper with jax.random
        # (the on-chip pltpu PRNG has no interpret-mode lowering).
        if rng_key is None:
            rng_key = jax.random.PRNGKey(0)
        bits = jax.random.bits(rng_key, (B_out, S, D), dtype=jnp.uint32)
        bits = (bits >> 1).astype(jnp.int32)                 # uniform in [0, 2^31)
        threshold = min(int(p * (1 << 31)), (1 << 31) - 1)   # keep iff bits >= thr
        kernel = functools.partial(_pe_train_kernel, threshold=threshold,
                                   scale=1.0 / (1.0 - p))
        bits_spec = pl.BlockSpec((tb, ts, D), lambda ib, js: (ib, js, 0))
        return pl.pallas_call(
            kernel,
            out_shape=jax.ShapeDtypeStruct((B_out, S, D), x.dtype),
            grid=grid,
            in_specs=[x_spec, pe_spec, bits_spec],
            out_specs=out_spec,
            compiler_params=compiler_params,
            input_output_aliases=io_aliases,
        )(x, pe_sliced, bits)

    return pl.pallas_call(
        _pe_eval_kernel,
        out_shape=jax.ShapeDtypeStruct((B_out, S, D), x.dtype),
        grid=grid,
        in_specs=[x_spec, pe_spec],
        out_specs=out_spec,
        compiler_params=compiler_params,
        input_output_aliases=io_aliases,
    )(x, pe_sliced)


if __name__ == "__main__":
    d_model, seq_len, batch, max_len = 128, 8, 1, 16
    dropout_p = 0.1

    key = jax.random.PRNGKey(0)
    x = jax.random.normal(key, (batch, seq_len, d_model), dtype=jnp.float32)
    pe = make_positional_encoding_table(d_model, max_len)

    # eval mode (dropout == identity): matches the literal torch forward
    out = positional_encoding_forward(x, pe, p=dropout_p, training=False)
    out = jax.block_until_ready(out)

    ref = x + pe[:, :seq_len, :]                       # pure-JAX reference (eval)
    assert out.shape == (max_len, seq_len, d_model), out.shape
    assert jnp.allclose(out, ref, atol=1e-6), float(jnp.abs(out - ref).max())

    # training mode: inverted dropout applied in-kernel
    out_train = positional_encoding_forward(
        x, pe, p=dropout_p, training=True, rng_key=jax.random.PRNGKey(42))
    out_train = jax.block_until_ready(out_train)
    assert out_train.shape == (max_len, seq_len, d_model)
    scale = 1.0 / (1.0 - dropout_p)
    ok = jnp.isclose(out_train, ref * scale, rtol=1e-5, atol=1e-6) | (out_train == 0)
    assert bool(jnp.all(ok))

    print("KERNEL_OK")
</pallas_src>

<mosaic_0001>
module attributes {stable_mosaic.version = 11 : i64} {
  func.func @_pe_eval_kernel(%arg0: i32, %arg1: i32, %arg2: memref<1x8x128xf32, #tpu.memory_space<vmem>>, %arg3: memref<16x1x128xf32, #tpu.memory_space<vmem>>, %arg4: memref<16x8x128xf32, #tpu.memory_space<vmem>>) attributes {dimension_semantics = [#tpu.dimension_semantics<parallel>, #tpu.dimension_semantics<parallel>], iteration_bounds = array<i64: 1, 1>, scalar_prefetch = 0 : i64, scratch_operands = 0 : i64, tpu.core_type = #tpu.core_type<tc>, window_params = [{transform_indices = @transform_0, window_bounds = array<i64: 1, 8, 128>}, {transform_indices = @transform_1, window_bounds = array<i64: 16, 1, 128>}, {transform_indices = @transform_2, window_bounds = array<i64: 16, 8, 128>}]} {
    %c0 = arith.constant 0 : index
    %c0_0 = arith.constant 0 : index
    %c0_1 = arith.constant 0 : index
    %0 = vector.load %arg2[%c0, %c0_0, %c0_1] : memref<1x8x128xf32, #tpu.memory_space<vmem>>, vector<1x8x128xf32>
    %c0_2 = arith.constant 0 : index
    %c0_3 = arith.constant 0 : index
    %c0_4 = arith.constant 0 : index
    %1 = vector.load %arg3[%c0_2, %c0_3, %c0_4] : memref<16x1x128xf32, #tpu.memory_space<vmem>>, vector<16x1x128xf32>
    %2 = vector.broadcast %0 : vector<1x8x128xf32> to vector<16x8x128xf32>
    %3 = vector.broadcast %1 : vector<16x1x128xf32> to vector<16x8x128xf32>
    %4 = arith.addf %2, %3 : vector<16x8x128xf32>
    %c0_5 = arith.constant 0 : index
    %c0_6 = arith.constant 0 : index
    %c0_7 = arith.constant 0 : index
    %5 = vector.load %arg4[%c0_5, %c0_6, %c0_7] : memref<16x8x128xf32, #tpu.memory_space<vmem>>, vector<16x8x128xf32>
    tpu.vector_store %arg4[%c0_5, %c0_6, %c0_7], %4 {strides = array<i32>} : memref<16x8x128xf32, #tpu.memory_space<vmem>>, vector<16x8x128xf32>,
    return
  }
  func.func @transform_0(%arg0: i32, %arg1: i32) -> (i32, i32, i32) {
    %c0_i32 = arith.constant 0 : i32
    %c0_i32_0 = arith.constant 0 : i32
    %c0_i32_1 = arith.constant 0 : i32
    return %c0_i32, %arg1, %c0_i32_0 : i32, i32, i32
  }
  func.func @transform_1(%arg0: i32, %arg1: i32) -> (i32, i32, i32) {
    %c0_i32 = arith.constant 0 : i32
    %c0_i32_0 = arith.constant 0 : i32
    %c0_i32_1 = arith.constant 0 : i32
    return %arg0, %c0_i32, %c0_i32_0 : i32, i32, i32
  }
  func.func @transform_2(%arg0: i32, %arg1: i32) -> (i32, i32, i32) {
    %c0_i32 = arith.constant 0 : i32
    %c0_i32_0 = arith.constant 0 : i32
    return %arg0, %arg1, %c0_i32 : i32, i32, i32
  }
}

</mosaic_0001>

<llo_original>
// kernel: tpu_custom_call.1
$region0: #{tpu_custom_call.1}
  #allocation0 [shape = 'u32[]', space=smem, size = 0x4, offset = 0x4, fixed_abs, tag = 'smem constant byte address 0x4 - core index']
  #allocation1 [shape = 'u32[144,128]{1,0:T(1,128)}', space=vmem, size = 0x12000, scoped, tag = 'internal scratch']
  %s0 = inlined_call_operand.hbm [shape: f32[1,8,128], index: 0, kind: input, shape index: {}]
  %s1 = inlined_call_operand.hbm [shape: f32[16,1,128], index: 1, kind: input, shape index: {}]
  %s2 = inlined_call_operand.hbm [shape: f32[16,8,128], index: 2, kind: output, shape index: {}]
  %s3 = sld [smem:[#allocation0]]
  $region26: #{tpu_custom_call.1} parent=0
    _
  %s5 = ssub.s32 1, %s3
  %s6 = scalar_select 0, %s5, %s3
  $region1: #{tpu_custom_call.1} parent=0
    #allocation2 [shape = 'u8[4096]{0}', space=vmem, size = 0x1000, scoped, tag = 'input window, operand 0, single buffered']
    #allocation3 [shape = 's32[1]{0}', space=sflag, size = 0x4, scoped, tag = 'scoped memory for tpu_custom_call.1']
    #allocation4 [shape = 's32[1]{0}', space=sflag, size = 0x4, scoped, tag = 'scoped memory for tpu_custom_call.1']
    #allocation5 [shape = 'u8[8192]{0}', space=vmem, size = 0x2000, scoped, tag = 'input window, operand 1, single buffered']
    #allocation6 [shape = 's32[1]{0}', space=sflag, size = 0x4, scoped, tag = 'scoped memory for tpu_custom_call.1']
    #allocation7 [shape = 'u8[65536]{0}', space=vmem, size = 0x10000, scoped, tag = 'output window, operand 0, single buffered']
    %7 = vsyncpa [#allocation3], 0
    %8 = vsyncpa [#allocation6], 0
    %9 = vsyncpa [#allocation4], 0
    // Predicated region
    $region2: #{tpu_custom_call.1} parent=1 // pred_check
      _
    $region3: #{tpu_custom_call.1} parent=1 // pred_check_branch
      %11 = sbr.rel (0) target = $region5
    $region4: #{tpu_custom_call.1} parent=1 // pred_region
      %s13 = ssub.s32 128, 128
      %14 = vsyncadd [#allocation3], %s13
      %s16 = sshll.u32 [#allocation2], 4
      %s17 = int_to_ptr.vmem [resolvable:$true] %s16
      %19 = dma.hbm_to_vmem [thread:$0]  %s0, 128, %s17, [#allocation3]
    $region5: #{tpu_custom_call.1} parent=1 // pred_fallthru
      _
    // Predicated region
    $region6: #{tpu_custom_call.1} parent=1 // pred_check
      _
    $region7: #{tpu_custom_call.1} parent=1 // pred_check_branch
      %21 = sbr.rel (0) target = $region9
    $region8: #{tpu_custom_call.1} parent=1 // pred_region
      %s23 = ssub.s32 256, 256
      %24 = vsyncadd [#allocation6], %s23
      %s25 = sshll.u32 [#allocation5], 4
      %s26 = int_to_ptr.vmem [resolvable:$true] %s25
      %31 = dma.hbm_to_vmem [thread:$0]  %s1, 256, %s26, [#allocation6], 16, 16, 1
    $region9: #{tpu_custom_call.1} parent=1 // pred_fallthru
      _
    // Predicated region
    $region10: #{tpu_custom_call.1} parent=1 // pred_check
      _
    $region11: #{tpu_custom_call.1} parent=1 // pred_check_branch
      %33 = sbr.rel (0) target = $region13
    $region12: #{tpu_custom_call.1} parent=1 // pred_region
      %34 = dma.done [#allocation3], 128
    $region13: #{tpu_custom_call.1} parent=1 // pred_fallthru
      _
    // Predicated region
    $region14: #{tpu_custom_call.1} parent=1 // pred_check
      _
    $region15: #{tpu_custom_call.1} parent=1 // pred_check_branch
      %36 = sbr.rel (0) target = $region17
    $region16: #{tpu_custom_call.1} parent=1 // pred_region
      %37 = dma.done [#allocation6], 256
    $region17: #{tpu_custom_call.1} parent=1 // pred_fallthru
      _
    %v38 = vld [vmem:[#allocation2] sm:$0xff]
    %v39 = vld [vmem:[#allocation5] sm:$0x1]
    %v40 = vld [vmem:[#allocation5 + $0x1] sm:$0x1]
    %v41 = vld [vmem:[#allocation5 + $0x2] sm:$0x1]
    %v42 = vld [vmem:[#allocation5 + $0x3] sm:$0x1]
    %v43 = vld [vmem:[#allocation5 + $0x4] sm:$0x1]
    %v44 = vld [vmem:[#allocation5 + $0x5] sm:$0x1]
    %v45 = vld [vmem:[#allocation5 + $0x6] sm:$0x1]
    %v46 = vld [vmem:[#allocation5 + $0x7] sm:$0x1]
    %v47 = vld [vmem:[#allocation5 + $0x8] sm:$0x1]
    %v48 = vld [vmem:[#allocation5 + $0x9] sm:$0x1]
    %v49 = vld [vmem:[#allocation5 + $0xa] sm:$0x1]
    %v50 = vld [vmem:[#allocation5 + $0xb] sm:$0x1]
    %v51 = vld [vmem:[#allocation5 + $0xc] sm:$0x1]
    %v52 = vld [vmem:[#allocation5 + $0xd] sm:$0x1]
    %v53 = vld [vmem:[#allocation5 + $0xe] sm:$0x1]
    %v54 = vld [vmem:[#allocation5 + $0xf] sm:$0x1]
    %v71 = vlaneseq
    %v72 = vshrl.u32 %v71, 7
    %v73 = vsub.s32 0, %v72
    %v74 = vrot.slane %v39, %v73
    %v75 = vlaneseq
    %v76 = vshrl.u32 %v75, 7
    %v77 = vsub.s32 0, %v76
    %v78 = vrot.slane %v40, %v77
    %v79 = vlaneseq
    %v80 = vshrl.u32 %v79, 7
    %v81 = vsub.s32 0, %v80
    %v82 = vrot.slane %v41, %v81
    %v83 = vlaneseq
    %v84 = vshrl.u32 %v83, 7
    %v85 = vsub.s32 0, %v84
    %v86 = vrot.slane %v42, %v85
    %v87 = vlaneseq
    %v88 = vshrl.u32 %v87, 7
    %v89 = vsub.s32 0, %v88
    %v90 = vrot.slane %v43, %v89
    %v91 = vlaneseq
    %v92 = vshrl.u32 %v91, 7
    %v93 = vsub.s32 0, %v92
    %v94 = vrot.slane %v44, %v93
    %v95 = vlaneseq
    %v96 = vshrl.u32 %v95, 7
    %v97 = vsub.s32 0, %v96
    %v98 = vrot.slane %v45, %v97
    %v99 = vlaneseq
    %v100 = vshrl.u32 %v99, 7
    %v101 = vsub.s32 0, %v100
    %v102 = vrot.slane %v46, %v101
    %v103 = vlaneseq
    %v104 = vshrl.u32 %v103, 7
    %v105 = vsub.s32 0, %v104
    %v106 = vrot.slane %v47, %v105
    %v107 = vlaneseq
    %v108 = vshrl.u32 %v107, 7
    %v109 = vsub.s32 0, %v108
    %v110 = vrot.slane %v48, %v109
    %v111 = vlaneseq
    %v112 = vshrl.u32 %v111, 7
    %v113 = vsub.s32 0, %v112
    %v114 = vrot.slane %v49, %v113
    %v115 = vlaneseq
    %v116 = vshrl.u32 %v115, 7
    %v117 = vsub.s32 0, %v116
    %v118 = vrot.slane %v50, %v117
    %v119 = vlaneseq
    %v120 = vshrl.u32 %v119, 7
    %v121 = vsub.s32 0, %v120
    %v122 = vrot.slane %v51, %v121
    %v123 = vlaneseq
    %v124 = vshrl.u32 %v123, 7
    %v125 = vsub.s32 0, %v124
    %v126 = vrot.slane %v52, %v125
    %v127 = vlaneseq
    %v128 = vshrl.u32 %v127, 7
    %v129 = vsub.s32 0, %v128
    %v130 = vrot.slane %v53, %v129
    %v131 = vlaneseq
    %v132 = vshrl.u32 %v131, 7
    %v133 = vsub.s32 0, %v132
    %v134 = vrot.slane %v54, %v133
    %v151 = vadd.f32 %v38, %v74
    %v152 = vadd.f32 %v38, %v78
    %v153 = vadd.f32 %v38, %v82
    %v154 = vadd.f32 %v38, %v86
    %v155 = vadd.f32 %v38, %v90
    %v156 = vadd.f32 %v38, %v94
    %v157 = vadd.f32 %v38, %v98
    %v158 = vadd.f32 %v38, %v102
    %v159 = vadd.f32 %v38, %v106
    %v160 = vadd.f32 %v38, %v110
    %v161 = vadd.f32 %v38, %v114
    %v162 = vadd.f32 %v38, %v118
    %v163 = vadd.f32 %v38, %v122
    %v164 = vadd.f32 %v38, %v126
    %v165 = vadd.f32 %v38, %v130
    %v166 = vadd.f32 %v38, %v134
    %167 = vst [vmem:[#allocation7] sm:$0xff] %v151
    %168 = vst [vmem:[#allocation7 + $0x8] sm:$0xff] %v152
    %169 = vst [vmem:[#allocation7 + $0x10] sm:$0xff] %v153
    %170 = vst [vmem:[#allocation7 + $0x18] sm:$0xff] %v154
    %171 = vst [vmem:[#allocation7 + $0x20] sm:$0xff] %v155
    %172 = vst [vmem:[#allocation7 + $0x28] sm:$0xff] %v156
    %173 = vst [vmem:[#allocation7 + $0x30] sm:$0xff] %v157
    %174 = vst [vmem:[#allocation7 + $0x38] sm:$0xff] %v158
    %175 = vst [vmem:[#allocation7 + $0x40] sm:$0xff] %v159
    %176 = vst [vmem:[#allocation7 + $0x48] sm:$0xff] %v160
    %177 = vst [vmem:[#allocation7 + $0x50] sm:$0xff] %v161
    %178 = vst [vmem:[#allocation7 + $0x58] sm:$0xff] %v162
    %179 = vst [vmem:[#allocation7 + $0x60] sm:$0xff] %v163
    %180 = vst [vmem:[#allocation7 + $0x68] sm:$0xff] %v164
    %181 = vst [vmem:[#allocation7 + $0x70] sm:$0xff] %v165
    %182 = vst [vmem:[#allocation7 + $0x78] sm:$0xff] %v166
    // Predicated region
    $region18: #{tpu_custom_call.1} parent=1 // pred_check
      _
    $region19: #{tpu_custom_call.1} parent=1 // pred_check_branch
      %184 = sbr.rel (0) target = $region21
    $region20: #{tpu_custom_call.1} parent=1 // pred_region
      %s186 = ssub.s32 2048, 2048
      %187 = vsyncadd [#allocation4], %s186
      %s188 = sshll.u32 [#allocation7], 4
      %s189 = int_to_ptr.vmem [resolvable:$true] %s188
      %194 = dma.vmem_to_hbm [thread:$0]  %s189, 2048, %s2, [#allocation4], 128, 128, 8
    $region21: #{tpu_custom_call.1} parent=1 // pred_fallthru
      _
    // Predicated region
    $region22: #{tpu_custom_call.1} parent=1 // pred_check
      _
    $region23: #{tpu_custom_call.1} parent=1 // pred_check_branch
      %196 = sbr.rel (0) target = $region25
    $region24: #{tpu_custom_call.1} parent=1 // pred_region
      %197 = dma.done [#allocation4], 2048
    $region25: #{tpu_custom_call.1} parent=1 // pred_fallthru
      _
    %198 = vsyncpa [#allocation3], 1
    %199 = vsyncpa [#allocation6], 1
    %200 = vsyncpa [#allocation4], 1

</llo_original>
